<compile_context>
chip_gen: v7x
topology: tpu7x:2x2x1
jax: 0.10.0
libtpu: 0.0.40
codegen_flags: <defaults>
</compile_context>

<pallas_src>
import math
import functools

import jax
import jax.numpy as jnp
import numpy as np
from jax.experimental import pallas as pl
from jax.experimental.pallas import tpu as pltpu


def _activate(logits, gate_activation, tau):
    if gate_activation == "ReTanH":
        return jnp.maximum(jnp.tanh(logits), 0.0)
    if gate_activation == "Sigmoid":
        return jax.nn.sigmoid(logits)
    if gate_activation == "GeReTanH":
        ttau = math.tanh(tau)
        return jnp.maximum((jnp.tanh(logits - tau) + ttau) / (1.0 + ttau), 0.0)
    raise NotImplementedError(gate_activation)


def _spatial_gate_kernel(w_ref, b_ref, data_ref, gate_in_ref, out_ref, *,
                         num_groups, use_mxu, gate_activation, tau):
    # data_ref / gate_in_ref / out_ref : (C, T)  -- batch dim squeezed, T = lane tile
    # use_mxu=True : w_ref (G, C) VMEM, b_ref (G, 1) VMEM
    # use_mxu=False: w_ref (G, C) SMEM, b_ref (G,)  SMEM (scalar reads, VPU MAC)
    C, T = data_ref.shape
    G = num_groups
    Cg = C // G

    if use_mxu:
        xf = gate_in_ref[...].astype(jnp.float32)                     # (C, T)
        logits = jnp.dot(w_ref[...].astype(jnp.float32), xf,
                         preferred_element_type=jnp.float32)          # (G, T)
        logits = logits + b_ref[...].astype(jnp.float32)

    for g in range(G):                                                # G is tiny, static unroll
        if use_mxu:
            logit_g = logits[g:g + 1, :]                              # (1, T) f32
        else:
            # VPU multiply-accumulate over channels; weights are SMEM scalars.
            acc = w_ref[g, 0] * gate_in_ref[0:1, :].astype(jnp.float32)
            for c in range(1, C):
                acc = acc + w_ref[g, c] * gate_in_ref[c:c + 1, :].astype(jnp.float32)
            logit_g = acc + b_ref[g]                                  # (1, T) f32

        gate_g = _activate(logit_g, gate_activation, tau)             # (1, T) f32
        gate_g = gate_g.astype(out_ref.dtype)                         # multiply in native dtype

        sl = slice(g * Cg, (g + 1) * Cg)                              # static sublane slice
        out_ref[sl, :] = data_ref[sl, :] * gate_g                     # sublane-broadcast VPU mul


def _choose_lane_tile(hw, c, itemsize, vmem_budget_bytes=16 * 1024 * 1024,
                      max_tile=8192):
    """Largest lane tile (multiple of 128) s.t. 3 double-buffered (C,T) tensors
    fit a conservative VMEM budget valid on v5e / v6e / v7x."""
    c_pad = max(8, ((c + 7) // 8) * 8)
    t_budget = vmem_budget_bytes // (6 * c_pad * itemsize)   # 3 tensors x 2 buffers
    t_budget = max(128, (t_budget // 128) * 128)
    t = min(max_tile, t_budget)
    if hw <= t:
        return hw          # full spatial extent -> one lane-dense block, no tiling constraint
    return t


def spatial_gate_forward(data_input, gate_input, weight, bias, *, num_groups=1,
                         gate_activation="ReTanH", tau=None, lane_tile=None):
    """data_input, gate_input: (B, C, H, W) NCHW.  weight: (G, C), bias: (G,)."""
    B, C, H, W = data_input.shape
    G = num_groups
    assert gate_input.shape == (B, C, H, W)
    assert weight.shape == (G, C) and bias.shape == (G,)
    assert C % G == 0
    HW = H * W

    # NCHW -> NC(HW): channels on sublanes, flattened spatial on lanes.
    # (Note: for C < 8 sublane occupancy could be improved further by packing
    # 8//C batches per block; not done here to keep the kernel simple.)
    data2 = data_input.reshape(B, C, HW)
    gate2 = gate_input.reshape(B, C, HW)

    itemsize = jnp.dtype(data_input.dtype).itemsize
    T = lane_tile if lane_tile is not None else _choose_lane_tile(HW, C, itemsize)
    grid = (B, pl.cdiv(HW, T))

    # Small-C path: weights/bias live in SMEM, logits via VPU MAC (the MXU
    # would be <1% utilized).  Large-C path keeps the MXU matmul.
    use_mxu = C >= 128
    if use_mxu:
        w_spec = pl.BlockSpec((G, C), lambda b, t: (0, 0))
        b_spec = pl.BlockSpec((G, 1), lambda b, t: (0, 0))
        bias_arg = bias.reshape(G, 1)
    else:
        w_spec = pl.BlockSpec(memory_space=pltpu.MemorySpace.SMEM)
        b_spec = pl.BlockSpec(memory_space=pltpu.MemorySpace.SMEM)
        bias_arg = bias

    kernel = functools.partial(_spatial_gate_kernel, num_groups=G,
                               use_mxu=use_mxu, gate_activation=gate_activation,
                               tau=tau)

    tile_spec = pl.BlockSpec((None, C, T), lambda b, t: (b, 0, t))

    out = pl.pallas_call(
        kernel,
        out_shape=jax.ShapeDtypeStruct((B, C, HW), data_input.dtype),
        grid=grid,
        in_specs=[w_spec, b_spec, tile_spec, tile_spec],
        out_specs=pl.BlockSpec((None, C, T), lambda b, t: (b, 0, t)),
        compiler_params=pltpu.CompilerParams(
            dimension_semantics=("parallel", "parallel")),
    )(weight, bias_arg, data2, gate2)

    return out.reshape(B, C, H, W)


def _reference(data_input, gate_input, weight, bias, num_groups):
    # Pure-JAX reference mirroring the PyTorch forward (ReTanH path).
    B, C, H, W = data_input.shape
    G = num_groups
    x = gate_input.reshape(B, C, H * W)
    logits = jnp.einsum("gc,bcs->bgs", weight, x) + bias[None, :, None]
    gate = jnp.maximum(jnp.tanh(logits), 0.0)                      # (B, G, HW)
    data = data_input.reshape(B, G, C // G, H * W)
    out = data * gate[:, :, None, :]
    return out.reshape(B, C, H, W)


if __name__ == "__main__":
    # Module config: SpatialGate(in_channels=4, num_groups=2, kernel_size=1)
    B, C, H, W = 2, 4, 16, 16
    num_groups = 2
    init_gate = 0.99

    key = jax.random.PRNGKey(0)
    k_data, k_gate, k_w = jax.random.split(key, 3)

    data_input = jax.random.normal(k_data, (B, C, H, W), dtype=jnp.float32)
    gate_input = jax.random.normal(k_gate, (B, C, H, W), dtype=jnp.float32)

    # init_parameters(): weight ~ N(0, 0.01), bias = 0.5*log((1+g)/(1-g)) for ReTanH
    weight = 0.01 * jax.random.normal(k_w, (num_groups, C), dtype=jnp.float32)
    bias_value = 0.5 * math.log((1.0 + init_gate) / (1.0 - init_gate))
    bias = jnp.full((num_groups,), bias_value, dtype=jnp.float32)

    out = spatial_gate_forward(data_input, gate_input, weight, bias,
                               num_groups=num_groups)
    out = jax.block_until_ready(out)

    ref = _reference(data_input, gate_input, weight, bias, num_groups)
    np.testing.assert_allclose(np.asarray(out), np.asarray(ref),
                               rtol=1e-5, atol=1e-5)

    print("KERNEL_OK")
</pallas_src>

<mosaic_0001>
module attributes {stable_mosaic.version = 11 : i64} {
  func.func @_spatial_gate_kernel(%arg0: i32, %arg1: i32, %arg2: memref<2x4xf32, #tpu.memory_space<smem>>, %arg3: memref<2xf32, #tpu.memory_space<smem>>, %arg4: memref<1x4x256xf32, #tpu.memory_space<vmem>>, %arg5: memref<1x4x256xf32, #tpu.memory_space<vmem>>, %arg6: memref<1x4x256xf32, #tpu.memory_space<vmem>>) attributes {dimension_semantics = [#tpu.dimension_semantics<parallel>, #tpu.dimension_semantics<parallel>], iteration_bounds = array<i64: 2, 1>, scalar_prefetch = 0 : i64, scratch_operands = 0 : i64, tpu.core_type = #tpu.core_type<tc>, window_params = [{transform_indices = @transform_0, window_bounds = array<i64: 2, 4>}, {transform_indices = @transform_1, window_bounds = array<i64: 2>}, {transform_indices = @transform_2, window_bounds = array<i64: 1, 4, 256>}, {transform_indices = @transform_3, window_bounds = array<i64: 1, 4, 256>}, {transform_indices = @transform_4, window_bounds = array<i64: 1, 4, 256>}]} {
    %c0 = arith.constant 0 : index
    %c0_0 = arith.constant 0 : index
    %0 = memref.load %arg2[%c0, %c0_0] : memref<2x4xf32, #tpu.memory_space<smem>>
    %c0_1 = arith.constant 0 : index
    %c0_2 = arith.constant 0 : index
    %c0_3 = arith.constant 0 : index
    %1 = vector.load %arg5[%c0_1, %c0_2, %c0_3] : memref<1x4x256xf32, #tpu.memory_space<vmem>>, vector<1x1x256xf32>
    %2 = vector.shape_cast %1 : vector<1x1x256xf32> to vector<1x256xf32>
    %3 = vector.broadcast %0 : f32 to vector<1x256xf32>
    %4 = arith.mulf %3, %2 : vector<1x256xf32>
    %c0_4 = arith.constant 0 : index
    %c1 = arith.constant 1 : index
    %5 = memref.load %arg2[%c0_4, %c1] : memref<2x4xf32, #tpu.memory_space<smem>>
    %c0_5 = arith.constant 0 : index
    %c1_6 = arith.constant 1 : index
    %c0_7 = arith.constant 0 : index
    %6 = vector.load %arg5[%c0_5, %c1_6, %c0_7] : memref<1x4x256xf32, #tpu.memory_space<vmem>>, vector<1x1x256xf32>
    %7 = vector.shape_cast %6 : vector<1x1x256xf32> to vector<1x256xf32>
    %8 = vector.broadcast %5 : f32 to vector<1x256xf32>
    %9 = arith.mulf %8, %7 : vector<1x256xf32>
    %10 = arith.addf %4, %9 : vector<1x256xf32>
    %c0_8 = arith.constant 0 : index
    %c2 = arith.constant 2 : index
    %11 = memref.load %arg2[%c0_8, %c2] : memref<2x4xf32, #tpu.memory_space<smem>>
    %c0_9 = arith.constant 0 : index
    %c2_10 = arith.constant 2 : index
    %c0_11 = arith.constant 0 : index
    %12 = vector.load %arg5[%c0_9, %c2_10, %c0_11] : memref<1x4x256xf32, #tpu.memory_space<vmem>>, vector<1x1x256xf32>
    %13 = vector.shape_cast %12 : vector<1x1x256xf32> to vector<1x256xf32>
    %14 = vector.broadcast %11 : f32 to vector<1x256xf32>
    %15 = arith.mulf %14, %13 : vector<1x256xf32>
    %16 = arith.addf %10, %15 : vector<1x256xf32>
    %c0_12 = arith.constant 0 : index
    %c3 = arith.constant 3 : index
    %17 = memref.load %arg2[%c0_12, %c3] : memref<2x4xf32, #tpu.memory_space<smem>>
    %c0_13 = arith.constant 0 : index
    %c3_14 = arith.constant 3 : index
    %c0_15 = arith.constant 0 : index
    %18 = vector.load %arg5[%c0_13, %c3_14, %c0_15] : memref<1x4x256xf32, #tpu.memory_space<vmem>>, vector<1x1x256xf32>
    %19 = vector.shape_cast %18 : vector<1x1x256xf32> to vector<1x256xf32>
    %20 = vector.broadcast %17 : f32 to vector<1x256xf32>
    %21 = arith.mulf %20, %19 : vector<1x256xf32>
    %22 = arith.addf %16, %21 : vector<1x256xf32>
    %c0_16 = arith.constant 0 : index
    %23 = memref.load %arg3[%c0_16] : memref<2xf32, #tpu.memory_space<smem>>
    %24 = vector.broadcast %23 : f32 to vector<1x256xf32>
    %25 = arith.addf %22, %24 : vector<1x256xf32>
    %26 = math.tanh %25 : vector<1x256xf32>
    %cst = arith.constant 0.000000e+00 : f32
    %27 = vector.broadcast %cst : f32 to vector<1x256xf32>
    %28 = arith.maximumf %26, %27 : vector<1x256xf32>
    %c0_17 = arith.constant 0 : index
    %c0_18 = arith.constant 0 : index
    %c0_19 = arith.constant 0 : index
    %29 = vector.load %arg4[%c0_17, %c0_18, %c0_19] : memref<1x4x256xf32, #tpu.memory_space<vmem>>, vector<1x2x256xf32>
    %30 = vector.shape_cast %29 : vector<1x2x256xf32> to vector<2x256xf32>
    %31 = vector.broadcast %28 : vector<1x256xf32> to vector<2x256xf32>
    %32 = arith.mulf %30, %31 : vector<2x256xf32>
    %c0_20 = arith.constant 0 : index
    %c0_21 = arith.constant 0 : index
    %c0_22 = arith.constant 0 : index
    %33 = vector.load %arg6[%c0_20, %c0_21, %c0_22] : memref<1x4x256xf32, #tpu.memory_space<vmem>>, vector<1x2x256xf32>
    %34 = vector.shape_cast %33 : vector<1x2x256xf32> to vector<2x256xf32>
    %35 = vector.shape_cast %32 : vector<2x256xf32> to vector<1x2x256xf32>
    tpu.vector_store %arg6[%c0_20, %c0_21, %c0_22], %35 {strides = array<i32>} : memref<1x4x256xf32, #tpu.memory_space<vmem>>, vector<1x2x256xf32>,
    %c1_23 = arith.constant 1 : index
    %c0_24 = arith.constant 0 : index
    %36 = memref.load %arg2[%c1_23, %c0_24] : memref<2x4xf32, #tpu.memory_space<smem>>
    %c0_25 = arith.constant 0 : index
    %c0_26 = arith.constant 0 : index
    %c0_27 = arith.constant 0 : index
    %37 = vector.load %arg5[%c0_25, %c0_26, %c0_27] : memref<1x4x256xf32, #tpu.memory_space<vmem>>, vector<1x1x256xf32>
    %38 = vector.shape_cast %37 : vector<1x1x256xf32> to vector<1x256xf32>
    %39 = vector.broadcast %36 : f32 to vector<1x256xf32>
    %40 = arith.mulf %39, %38 : vector<1x256xf32>
    %c1_28 = arith.constant 1 : index
    %c1_29 = arith.constant 1 : index
    %41 = memref.load %arg2[%c1_28, %c1_29] : memref<2x4xf32, #tpu.memory_space<smem>>
    %c0_30 = arith.constant 0 : index
    %c1_31 = arith.constant 1 : index
    %c0_32 = arith.constant 0 : index
    %42 = vector.load %arg5[%c0_30, %c1_31, %c0_32] : memref<1x4x256xf32, #tpu.memory_space<vmem>>, vector<1x1x256xf32>
    %43 = vector.shape_cast %42 : vector<1x1x256xf32> to vector<1x256xf32>
    %44 = vector.broadcast %41 : f32 to vector<1x256xf32>
    %45 = arith.mulf %44, %43 : vector<1x256xf32>
    %46 = arith.addf %40, %45 : vector<1x256xf32>
    %c1_33 = arith.constant 1 : index
    %c2_34 = arith.constant 2 : index
    %47 = memref.load %arg2[%c1_33, %c2_34] : memref<2x4xf32, #tpu.memory_space<smem>>
    %c0_35 = arith.constant 0 : index
    %c2_36 = arith.constant 2 : index
    %c0_37 = arith.constant 0 : index
    %48 = vector.load %arg5[%c0_35, %c2_36, %c0_37] : memref<1x4x256xf32, #tpu.memory_space<vmem>>, vector<1x1x256xf32>
    %49 = vector.shape_cast %48 : vector<1x1x256xf32> to vector<1x256xf32>
    %50 = vector.broadcast %47 : f32 to vector<1x256xf32>
    %51 = arith.mulf %50, %49 : vector<1x256xf32>
    %52 = arith.addf %46, %51 : vector<1x256xf32>
    %c1_38 = arith.constant 1 : index
    %c3_39 = arith.constant 3 : index
    %53 = memref.load %arg2[%c1_38, %c3_39] : memref<2x4xf32, #tpu.memory_space<smem>>
    %c0_40 = arith.constant 0 : index
    %c3_41 = arith.constant 3 : index
    %c0_42 = arith.constant 0 : index
    %54 = vector.load %arg5[%c0_40, %c3_41, %c0_42] : memref<1x4x256xf32, #tpu.memory_space<vmem>>, vector<1x1x256xf32>
    %55 = vector.shape_cast %54 : vector<1x1x256xf32> to vector<1x256xf32>
    %56 = vector.broadcast %53 : f32 to vector<1x256xf32>
    %57 = arith.mulf %56, %55 : vector<1x256xf32>
    %58 = arith.addf %52, %57 : vector<1x256xf32>
    %c1_43 = arith.constant 1 : index
    %59 = memref.load %arg3[%c1_43] : memref<2xf32, #tpu.memory_space<smem>>
    %60 = vector.broadcast %59 : f32 to vector<1x256xf32>
    %61 = arith.addf %58, %60 : vector<1x256xf32>
    %62 = math.tanh %61 : vector<1x256xf32>
    %cst_44 = arith.constant 0.000000e+00 : f32
    %63 = vector.broadcast %cst_44 : f32 to vector<1x256xf32>
    %64 = arith.maximumf %62, %63 : vector<1x256xf32>
    %c0_45 = arith.constant 0 : index
    %c2_46 = arith.constant 2 : index
    %c0_47 = arith.constant 0 : index
    %65 = vector.load %arg4[%c0_45, %c2_46, %c0_47] : memref<1x4x256xf32, #tpu.memory_space<vmem>>, vector<1x2x256xf32>
    %66 = vector.shape_cast %65 : vector<1x2x256xf32> to vector<2x256xf32>
    %67 = vector.broadcast %64 : vector<1x256xf32> to vector<2x256xf32>
    %68 = arith.mulf %66, %67 : vector<2x256xf32>
    %c0_48 = arith.constant 0 : index
    %c2_49 = arith.constant 2 : index
    %c0_50 = arith.constant 0 : index
    %69 = vector.load %arg6[%c0_48, %c2_49, %c0_50] : memref<1x4x256xf32, #tpu.memory_space<vmem>>, vector<1x2x256xf32>
    %70 = vector.shape_cast %69 : vector<1x2x256xf32> to vector<2x256xf32>
    %71 = vector.shape_cast %68 : vector<2x256xf32> to vector<1x2x256xf32>
    tpu.vector_store %arg6[%c0_48, %c2_49, %c0_50], %71 {strides = array<i32>} : memref<1x4x256xf32, #tpu.memory_space<vmem>>, vector<1x2x256xf32>,
    return
  }
  func.func @transform_0(%arg0: i32, %arg1: i32) -> (i32, i32) {
    %c0_i32 = arith.constant 0 : i32
    %c0_i32_0 = arith.constant 0 : i32
    %c0_i32_1 = arith.constant 0 : i32
    return %c0_i32, %c0_i32_0 : i32, i32
  }
  func.func @transform_1(%arg0: i32, %arg1: i32) -> i32 {
    %c0_i32 = arith.constant 0 : i32
    %c0_i32_0 = arith.constant 0 : i32
    return %c0_i32 : i32
  }
  func.func @transform_2(%arg0: i32, %arg1: i32) -> (i32, i32, i32) {
    %c0_i32 = arith.constant 0 : i32
    %c0_i32_0 = arith.constant 0 : i32
    return %arg0, %c0_i32, %arg1 : i32, i32, i32
  }
  func.func @transform_3(%arg0: i32, %arg1: i32) -> (i32, i32, i32) {
    %c0_i32 = arith.constant 0 : i32
    %c0_i32_0 = arith.constant 0 : i32
    return %arg0, %c0_i32, %arg1 : i32, i32, i32
  }
  func.func @transform_4(%arg0: i32, %arg1: i32) -> (i32, i32, i32) {
    %c0_i32 = arith.constant 0 : i32
    %c0_i32_0 = arith.constant 0 : i32
    return %arg0, %c0_i32, %arg1 : i32, i32, i32
  }
}

</mosaic_0001>

<llo_original>
// kernel: tpu_custom_call.1
$region0: #{tpu_custom_call.1}
  #allocation0 [shape = 'u32[]', space=smem, size = 0x4, offset = 0x4, fixed_abs, tag = 'smem constant byte address 0x4 - core index']
  #allocation1 [shape = 'u32[144,128]{1,0:T(1,128)}', space=vmem, size = 0x12000, scoped, tag = 'internal scratch']
  %s0 = inlined_call_operand.hbm [shape: f32[2,4], index: 0, kind: input, shape index: {}]
  %s1 = inlined_call_operand.vmem [shape: f32[2], index: 1, kind: input, shape index: {}]
  %s2 = inlined_call_operand.hbm [shape: f32[2,4,256], index: 2, kind: input, shape index: {}]
  %s3 = inlined_call_operand.hbm [shape: f32[2,4,256], index: 3, kind: input, shape index: {}]
  %s4 = inlined_call_operand.hbm [shape: f32[2,4,256], index: 4, kind: output, shape index: {}]
  %s5 = sld [smem:[#allocation0]]
  $region65: #{tpu_custom_call.1} parent=0
    _
  %s7 = ssub.s32 1, %s5
  %s8 = scalar_select 0, %s7, %s5
  $region1: #{tpu_custom_call.1} parent=0
    #allocation2 [shape = 'u8[1024]{0}', space=smem, size = 0x400, scoped, tag = 'input window, operand 0, single buffered']
    #allocation3 [shape = 's32[2]{0}', space=sflag, size = 0x8, scoped, tag = 'scoped memory for tpu_custom_call.1']
    #allocation4 [shape = 's32[2]{0}', space=sflag, size = 0x8, scoped, tag = 'scoped memory for tpu_custom_call.1']
    #allocation5 [shape = 's32[2]{0}', space=sflag, size = 0x8, scoped, tag = 'scoped memory for tpu_custom_call.1']
    #allocation6 [shape = 's32[2]{0}', space=sflag, size = 0x8, scoped, tag = 'scoped memory for tpu_custom_call.1']
    #allocation7 [shape = 'u8[512]{0}', space=smem, size = 0x200, scoped, tag = 'input window, operand 1, single buffered']
    #allocation8 [shape = 'u8[8192]{0}', space=vmem, size = 0x2000, scoped, tag = 'input window, operand 2']
    #allocation9 [shape = 'u8[8192]{0}', space=vmem, size = 0x2000, scoped, tag = 'input window, operand 3']
    #allocation10 [shape = 's32[2]{0}', space=sflag, size = 0x8, scoped, tag = 'scoped memory for tpu_custom_call.1']
    #allocation11 [shape = 'u8[8192]{0}', space=vmem, size = 0x2000, scoped, tag = 'output window, operand 0']
    %9 = vsyncpa [#allocation5], 0
    %10 = vsyncpa [#allocation6], 0
    %11 = vsyncpa [#allocation3], 0
    %s12 = scalar_lea.sflag [#allocation3], 1
    %13 = vsyncpa %s12, 0
    %14 = vsyncpa [#allocation10], 0
    %s15 = scalar_lea.sflag [#allocation10], 1
    %16 = vsyncpa %s15, 0
    %17 = vsyncpa [#allocation4], 0
    %s18 = scalar_lea.sflag [#allocation4], 1
    %19 = vsyncpa %s18, 0
    loop: start=0, step=1, limit=4
    $region2: #{tpu_custom_call.1} parent=1 // loop_pre_header
      _
    $region3: #{tpu_custom_call.1} parent=1 // loop_header
      %s21 = sphi 0, %s25
      %p22 = scmp.ge.s32.totalorder %s21, 4
      %s28 = sphi 0, %s40
      %s29 = sphi 0, %s36
      %s30 = sphi 0, %s28
      %s31 = sphi 0, %s29
      %s32 = sphi 0, %s30
      %s33 = sphi 0, %s31
      %s41 = sphi 0, %s41
      %s43 = sphi 0, %s41
      %s44 = sphi 0, %s43
      %s58 = sphi 0, %s44
      %s62 = sphi 0, %s62
      %s64 = sphi 0, %s62
      %s65 = sphi 0, %s64
      %s79 = sphi 0, %s65
      %s87 = sphi 0, %s89
      %s90 = sphi 0, %s87
      %s91 = sphi 0, %s90
      %s107 = sphi 0, %s91
      %s115 = sphi 0, %s117
      %s118 = sphi 0, %s115
      %s119 = sphi 0, %s118
      %s135 = sphi 0, %s119
      %s143 = sphi 0, %s145
      %s146 = sphi 0, %s143
      %s147 = sphi 0, %s146
      %s163 = sphi 0, %s147
    $region4: #{tpu_custom_call.1} parent=1 // loop_header_branch
      %24 = sbr.rel (%p22) target = $region8
    $region5: #{tpu_custom_call.1} parent=1 // loop_body
      %s26 = ssub.s32 %s21, 1
      %s27 = ssub.s32 %s21, 2
      %s34 = sadd.s32 1, %s29
      %p35 = scmp.ge.s32.totalorder %s34, 1
      %s36 = scalar_select %p35, 0, %s34
      %s37 = sadd.s32 1, %s28
      %s38 = scalar_select %p35, %s37, %s28
      %p39 = scmp.ge.s32.totalorder %s38, 2
      %s40 = scalar_select %p39, 0, %s38
      %s42 = sadd.s32 %s41, 1
      %p45 = scmp.eq.s32.totalorder %s21, 1
      %p46 = scmp.ne.s32.totalorder %s41, %s43
      %p47 = scmp.eq.s32.totalorder %s21, 0
      %p48 = por %p46, %p47
      %p49 = scmp.ne.s32.totalorder %s41, %s43
      %p50 = scmp.eq.s32.totalorder %s26, 1
      %p51 = por %p49, %p50
      %p52 = scmp.ne.s32.totalorder %s43, %s44
      %p53 = scmp.eq.s32.totalorder %s26, 0
      %p54 = por %p52, %p53
      %p55 = scmp.ne.s32.totalorder %s43, %s44
      %p56 = scmp.eq.s32.totalorder %s27, 1
      %p57 = por %p55, %p56
      %p59 = scmp.ne.s32.totalorder %s44, %s58
      %p60 = scmp.eq.s32.totalorder %s27, 0
      %p61 = por %p59, %p60
      %s63 = sadd.s32 %s62, 1
      %p66 = scmp.eq.s32.totalorder %s21, 1
      %p67 = scmp.ne.s32.totalorder %s62, %s64
      %p68 = scmp.eq.s32.totalorder %s21, 0
      %p69 = por %p67, %p68
      %p70 = scmp.ne.s32.totalorder %s62, %s64
      %p71 = scmp.eq.s32.totalorder %s26, 1
      %p72 = por %p70, %p71
      %p73 = scmp.ne.s32.totalorder %s64, %s65
      %p74 = scmp.eq.s32.totalorder %s26, 0
      %p75 = por %p73, %p74
      %p76 = scmp.ne.s32.totalorder %s64, %s65
      %p77 = scmp.eq.s32.totalorder %s27, 1
      %p78 = por %p76, %p77
      %p80 = scmp.ne.s32.totalorder %s65, %s79
      %p81 = scmp.eq.s32.totalorder %s27, 0
      %p82 = por %p80, %p81
      %s83 = ssub.s32 %s28, %s40
      %s84 = ssub.s32 %s29, %s36
      %s85 = sor.u32 %s83, %s84
      %p86 = scmp.eq.s32.totalorder %s85, 0
      %s88 = sadd.s32 %s87, 1
      %s89 = scalar_select %p86, %s87, %s88
      %p92 = pneg %p86
      %p93 = scmp.eq.s32.totalorder %s21, 1
      %p94 = por %p92, %p93
      %p95 = scmp.ne.s32.totalorder %s87, %s90
      %p96 = scmp.eq.s32.totalorder %s21, 0
      %p97 = por %p95, %p96
      %p98 = scmp.ne.s32.totalorder %s87, %s90
      %p99 = scmp.eq.s32.totalorder %s26, 1
      %p100 = por %p98, %p99
      %p101 = scmp.ne.s32.totalorder %s90, %s91
      %p102 = scmp.eq.s32.totalorder %s26, 0
      %p103 = por %p101, %p102
      %p104 = scmp.ne.s32.totalorder %s90, %s91
      %p105 = scmp.eq.s32.totalorder %s27, 1
      %p106 = por %p104, %p105
      %p108 = scmp.ne.s32.totalorder %s91, %s107
      %p109 = scmp.eq.s32.totalorder %s27, 0
      %p110 = por %p108, %p109
      %s111 = ssub.s32 %s28, %s40
      %s112 = ssub.s32 %s29, %s36
      %s113 = sor.u32 %s111, %s112
      %p114 = scmp.eq.s32.totalorder %s113, 0
      %s116 = sadd.s32 %s115, 1
      %s117 = scalar_select %p114, %s115, %s116
      %p120 = pneg %p114
      %p121 = scmp.eq.s32.totalorder %s21, 1
      %p122 = por %p120, %p121
      %p123 = scmp.ne.s32.totalorder %s115, %s118
      %p124 = scmp.eq.s32.totalorder %s21, 0
      %p125 = por %p123, %p124
      %p126 = scmp.ne.s32.totalorder %s115, %s118
      %p127 = scmp.eq.s32.totalorder %s26, 1
      %p128 = por %p126, %p127
      %p129 = scmp.ne.s32.totalorder %s118, %s119
      %p130 = scmp.eq.s32.totalorder %s26, 0
      %p131 = por %p129, %p130
      %p132 = scmp.ne.s32.totalorder %s118, %s119
      %p133 = scmp.eq.s32.totalorder %s27, 1
      %p134 = por %p132, %p133
      %p136 = scmp.ne.s32.totalorder %s119, %s135
      %p137 = scmp.eq.s32.totalorder %s27, 0
      %p138 = por %p136, %p137
      %s139 = ssub.s32 %s28, %s40
      %s140 = ssub.s32 %s29, %s36
      %s141 = sor.u32 %s139, %s140
      %p142 = scmp.eq.s32.totalorder %s141, 0
      %s144 = sadd.s32 %s143, 1
      %s145 = scalar_select %p142, %s143, %s144
      %p148 = pneg %p142
      %p149 = scmp.eq.s32.totalorder %s21, 1
      %p150 = por %p148, %p149
      %p151 = scmp.ne.s32.totalorder %s143, %s146
      %p152 = scmp.eq.s32.totalorder %s21, 0
      %p153 = por %p151, %p152
      %p154 = scmp.ne.s32.totalorder %s143, %s146
      %p155 = scmp.eq.s32.totalorder %s26, 1
      %p156 = por %p154, %p155
      %p157 = scmp.ne.s32.totalorder %s146, %s147
      %p158 = scmp.eq.s32.totalorder %s26, 0
      %p159 = por %p157, %p158
      %p160 = scmp.ne.s32.totalorder %s146, %s147
      %p161 = scmp.eq.s32.totalorder %s27, 1
      %p162 = por %p160, %p161
      %p164 = scmp.ne.s32.totalorder %s147, %s163
      %p165 = scmp.eq.s32.totalorder %s27, 0
      %p166 = por %p164, %p165
      %p167 = scmp.le.s32.totalorder 1, %s21
      %p168 = scmp.lt.s32.totalorder %s21, 3
      %p169 = pnand %p167, %p168
      %p170 = pneg %p169
      // Predicated region
      $region9: #{tpu_custom_call.1} parent=5 // pred_check
        _
      $region10: #{tpu_custom_call.1} parent=5 // pred_check_branch
        %172 = sbr.rel (%p169) target = $region12
      $region11: #{tpu_custom_call.1} parent=5 // pred_region
        %s173 = ssub.s32 %s21, 1
        // Predicated region
        $region13: #{tpu_custom_call.1} parent=11 // pred_check
          %p174 = pneg %p54
        $region14: #{tpu_custom_call.1} parent=11 // pred_check_branch
          %176 = sbr.rel (%p174) target = $region16
        $region15: #{tpu_custom_call.1} parent=11 // pred_region
          %s178 = ssub.s32 32, 32
          %179 = vsyncadd [#allocation5], %s178
          %182 = dma.hbm_to_smem %s0, 32, [#allocation2], [#allocation5]
        $region16: #{tpu_custom_call.1} parent=11 // pred_fallthru
          _
        // Predicated region
        $region17: #{tpu_custom_call.1} parent=11 // pred_check
          %p183 = pneg %p75
        $region18: #{tpu_custom_call.1} parent=11 // pred_check_branch
          %185 = sbr.rel (%p183) target = $region20
        $region19: #{tpu_custom_call.1} parent=11 // pred_region
          %s187 = ssub.s32 16, 16
          %188 = vsyncadd [#allocation6], %s187
          %s190 = sshll.u32 %s1, 4
          %s191 = int_to_ptr.vmem [resolvable:$true] %s190
          %193 = dma.vmem_to_smem %s191, 16, [#allocation7], [#allocation6]
        $region20: #{tpu_custom_call.1} parent=11 // pred_fallthru
          _
      $region12: #{tpu_custom_call.1} parent=5 // pred_fallthru
        _
      %p194 = scmp.lt.s32.totalorder %s21, 2
      // Predicated region
      $region21: #{tpu_custom_call.1} parent=5 // pred_check
        %p195 = pneg %p194
      $region22: #{tpu_custom_call.1} parent=5 // pred_check_branch
        %197 = sbr.rel (%p195) target = $region24
      $region23: #{tpu_custom_call.1} parent=5 // pred_region
        // Predicated region
        $region25: #{tpu_custom_call.1} parent=23 // pred_check
          %p198 = pneg %p97
        $region26: #{tpu_custom_call.1} parent=23 // pred_check_branch
          %200 = sbr.rel (%p198) target = $region28
        $region27: #{tpu_custom_call.1} parent=23 // pred_region
          %s201 = sand.u32 %s87, 1
          %s202 = scalar_lea.sflag [#allocation3], %s201
          %s203 = sand.u32 %s87, 1
          %s204 = smul.addr %s203, 8
          %s205 = scalar_lea.vmem [#allocation8], %s204
          %s206 = smul.u32 2, %s29
          %s208 = ssub.s32 128, 128
          %209 = vsyncadd %s202, %s208
          %s210 = smul.addr %s28, 2
          %s211 = sadd.s32 %s206, %s210
          %s212 = smul.addr %s211, 64
          %s213 = scalar_lea.hbm %s2, %s212
          %s215 = sshll.u32 %s205, 4
          %s216 = int_to_ptr.vmem [resolvable:$true] %s215
          %218 = dma.hbm_to_vmem [thread:$0]  %s213, 128, %s216, %s202
        $region28: #{tpu_custom_call.1} parent=23 // pred_fallthru
          _
        // Predicated region
        $region29: #{tpu_custom_call.1} parent=23 // pred_check
          %p219 = pneg %p125
        $region30: #{tpu_custom_call.1} parent=23 // pred_check_branch
          %221 = sbr.rel (%p219) target = $region32
        $region31: #{tpu_custom_call.1} parent=23 // pred_region
          %s222 = sand.u32 %s115, 1
          %s223 = scalar_lea.sflag [#allocation10], %s222
          %s224 = sand.u32 %s115, 1
          %s225 = smul.addr %s224, 8
          %s226 = scalar_lea.vmem [#allocation9], %s225
          %s227 = smul.u32 2, %s29
          %s229 = ssub.s32 128, 128
          %230 = vsyncadd %s223, %s229
          %s231 = smul.addr %s28, 2
          %s232 = sadd.s32 %s227, %s231
          %s233 = smul.addr %s232, 64
          %s234 = scalar_lea.hbm %s3, %s233
          %s236 = sshll.u32 %s226, 4
          %s237 = int_to_ptr.vmem [resolvable:$true] %s236
          %239 = dma.hbm_to_vmem [thread:$0]  %s234, 128, %s237, %s223
        $region32: #{tpu_custom_call.1} parent=23 // pred_fallthru
          _
      $region24: #{tpu_custom_call.1} parent=5 // pred_fallthru
        _
      %p240 = scmp.le.s32.totalorder 1, %s21
      %p241 = scmp.lt.s32.totalorder %s21, 3
      %p242 = pnand %p240, %p241
      %p243 = pneg %p242
      // Predicated region
      $region33: #{tpu_custom_call.1} parent=5 // pred_check
        _
      $region34: #{tpu_custom_call.1} parent=5 // pred_check_branch
        %245 = sbr.rel (%p242) target = $region36
      $region35: #{tpu_custom_call.1} parent=5 // pred_region
        %s246 = ssub.s32 %s21, 1
        // Predicated region
        $region37: #{tpu_custom_call.1} parent=35 // pred_check
          %p247 = pneg %p54
        $region38: #{tpu_custom_call.1} parent=35 // pred_check_branch
          %249 = sbr.rel (%p247) target = $region40
        $region39: #{tpu_custom_call.1} parent=35 // pred_region
          %250 = dma.done [#allocation5], 32
        $region40: #{tpu_custom_call.1} parent=35 // pred_fallthru
          _
        // Predicated region
        $region41: #{tpu_custom_call.1} parent=35 // pred_check
          %p251 = pneg %p75
        $region42: #{tpu_custom_call.1} parent=35 // pred_check_branch
          %253 = sbr.rel (%p251) target = $region44
        $region43: #{tpu_custom_call.1} parent=35 // pred_region
          %254 = dma.done [#allocation6], 16
        $region44: #{tpu_custom_call.1} parent=35 // pred_fallthru
          _
        %s255 = sand.u32 %s90, 1
        %s256 = scalar_lea.sflag [#allocation3], %s255
        %s257 = sand.u32 %s90, 1
        %s258 = smul.addr %s257, 8
        %s259 = scalar_lea.vmem [#allocation8], %s258
        // Predicated region
        $region45: #{tpu_custom_call.1} parent=35 // pred_check
          %p260 = pneg %p103
        $region46: #{tpu_custom_call.1} parent=35 // pred_check_branch
          %262 = sbr.rel (%p260) target = $region48
        $region47: #{tpu_custom_call.1} parent=35 // pred_region
          %263 = dma.done %s256, 128
        $region48: #{tpu_custom_call.1} parent=35 // pred_fallthru
          _
        %s264 = sand.u32 %s118, 1
        %s265 = scalar_lea.sflag [#allocation10], %s264
        %s266 = sand.u32 %s118, 1
        %s267 = smul.addr %s266, 8
        %s268 = scalar_lea.vmem [#allocation9], %s267
        // Predicated region
        $region49: #{tpu_custom_call.1} parent=35 // pred_check
          %p269 = pneg %p131
        $region50: #{tpu_custom_call.1} parent=35 // pred_check_branch
          %271 = sbr.rel (%p269) target = $region52
        $region51: #{tpu_custom_call.1} parent=35 // pred_region
          %272 = dma.done %s265, 128
        $region52: #{tpu_custom_call.1} parent=35 // pred_fallthru
          _
        %273 = sfence
        %p274 = pneg %p54
        %p275 = pneg %p51
        %p276 = pneg %p75
        %p277 = pneg %p72
        %s278 = sand.u32 %s90, 1
        %s279 = scalar_lea.sflag [#allocation3], %s278
        %s280 = sand.u32 %s90, 1
        %s281 = smul.addr %s280, 8
        %s282 = scalar_lea.vmem [#allocation8], %s281
        %p283 = pneg %p103
        %p284 = pneg %p100
        %s285 = sand.u32 %s118, 1
        %s286 = scalar_lea.sflag [#allocation10], %s285
        %s287 = sand.u32 %s118, 1
        %s288 = smul.addr %s287, 8
        %s289 = scalar_lea.vmem [#allocation9], %s288
        %p290 = pneg %p131
        %p291 = pneg %p128
        %p292 = pneg %p159
        %p293 = pneg %p156
        %s294 = sand.u32 %s146, 1
        %s295 = scalar_lea.sflag [#allocation4], %s294
        %s296 = sand.u32 %s146, 1
        %s297 = smul.addr %s296, 8
        %s298 = scalar_lea.vmem [#allocation11], %s297
        %s299 = smul.u32 2, %s31
        %s300 = smul.u32 2, %s31
        %s301 = smul.u32 2, %s31
        %s302 = sld [smem:[#allocation2]]
        %v303 = vld [vmem:[%s268] ss:$4 sm:$0x3]
        %v304 = vstv %s302
        %v305 = vmul.f32 %v304, %v303
        %s306 = sld [smem:[#allocation2 + $0x1]]
        %s307 = scalar_lea.vmem %s268, 1 [#allocation9]
        %v308 = vld [vmem:[%s307] ss:$4 sm:$0x3]
        %v309 = vstv %s306
        %v310 = vmul.f32 %v309, %v308
        %v311 = vadd.f32 %v305, %v310
        %s312 = sld [smem:[#allocation2 + $0x2]]
        %s313 = scalar_lea.vmem %s268, 2 [#allocation9]
        %v314 = vld [vmem:[%s313] ss:$4 sm:$0x3]
        %v315 = vstv %s312
        %v316 = vmul.f32 %v315, %v314
        %v317 = vadd.f32 %v311, %v316
        %s318 = sld [smem:[#allocation2 + $0x3]]
        %s319 = scalar_lea.vmem %s268, 3 [#allocation9]
        %v320 = vld [vmem:[%s319] ss:$4 sm:$0x3]
        %v321 = vstv %s318
        %v322 = vmul.f32 %v321, %v320
        %v323 = vadd.f32 %v317, %v322
        %s324 = sld [smem:[#allocation7]]
        %v325 = vstv %s324
        %v326 = vadd.f32 %v323, %v325
        %v327 = vtanh.pop %v326
        %v328 = vmax.f32 %v327, 0.0
        %v329 = vld [vmem:[%s259] sm:$0x33]
        %v331 = vlaneseq
        %v332 = vshrl.u32 %v331, 7
        %v333 = vsub.s32 0, %v332
        %v334 = vrot.slane %v328, %v333
        %v335 = vlaneseq
        %v336 = vshrl.u32 %v335, 7
        %v337 = vsub.s32 1, %v336
        %v338 = vrot.slane %v328, %v337
        %v339 = vcombine.low %v334, %v338
        %v341 = vmul.f32 %v329, %v339
        %342 = vst [vmem:[%s298] sm:$0x33] %v341
        %s343 = sld [smem:[#allocation2 + $0x80]]
        %v344 = vld [vmem:[%s268] ss:$4 sm:$0x3]
        %v345 = vstv %s343
        %v346 = vmul.f32 %v345, %v344
        %s347 = sld [smem:[#allocation2 + $0x81]]
        %v348 = vld [vmem:[%s307] ss:$4 sm:$0x3]
        %v349 = vstv %s347
        %v350 = vmul.f32 %v349, %v348
        %v351 = vadd.f32 %v346, %v350
        %s352 = sld [smem:[#allocation2 + $0x82]]
        %v353 = vld [vmem:[%s313] ss:$4 sm:$0x3]
        %v354 = vstv %s352
        %v355 = vmul.f32 %v354, %v353
        %v356 = vadd.f32 %v351, %v355
        %s357 = sld [smem:[#allocation2 + $0x83]]
        %v358 = vld [vmem:[%s319] ss:$4 sm:$0x3]
        %v359 = vstv %s357
        %v360 = vmul.f32 %v359, %v358
        %v361 = vadd.f32 %v356, %v360
        %s362 = sld [smem:[#allocation7 + $0x1]]
        %v363 = vstv %s362
        %v364 = vadd.f32 %v361, %v363
        %v365 = vtanh.pop %v364
        %v366 = vmax.f32 %v365, 0.0
        %v367 = vld [vmem:[%s259] sm:$0xcc]
        %v369 = vlaneseq
        %v370 = vshrl.u32 %v369, 7
        %v371 = vsub.s32 0, %v370
        %v372 = vrot.slane %v366, %v371
        %v373 = vlaneseq
        %v374 = vshrl.u32 %v373, 7
        %v375 = vsub.s32 1, %v374
        %v376 = vrot.slane %v366, %v375
        %v377 = vcombine.low %v372, %v376
        %v378 = vrot.slane %v377, 6
        %v380 = vmul.f32 %v367, %v378
        %381 = vst [vmem:[%s298] sm:$0xcc] %v380
        %s382 = sand.u32 %s146, 1
        %s383 = scalar_lea.sflag [#allocation4], %s382
        %s384 = sand.u32 %s146, 1
        %s385 = smul.addr %s384, 8
        %s386 = scalar_lea.vmem [#allocation11], %s385
        // Predicated region
        $region53: #{tpu_custom_call.1} parent=35 // pred_check
          %p387 = pneg %p156
        $region54: #{tpu_custom_call.1} parent=35 // pred_check_branch
          %389 = sbr.rel (%p387) target = $region56
        $region55: #{tpu_custom_call.1} parent=35 // pred_region
          %s390 = smul.u32 2, %s31
          %s392 = ssub.s32 128, 128
          %393 = vsyncadd %s383, %s392
          %s394 = smul.addr %s30, 2
          %s395 = sadd.s32 %s390, %s394
          %s396 = smul.addr %s395, 64
          %s397 = scalar_lea.hbm %s4, %s396
          %s399 = sshll.u32 %s386, 4
          %s400 = int_to_ptr.vmem [resolvable:$true] %s399
          %402 = dma.vmem_to_hbm [thread:$0]  %s400, 128, %s397, %s383
        $region56: #{tpu_custom_call.1} parent=35 // pred_fallthru
          _
      $region36: #{tpu_custom_call.1} parent=5 // pred_fallthru
        _
      %p403 = scmp.le.s32.totalorder 2, %s21
      // Predicated region
      $region57: #{tpu_custom_call.1} parent=5 // pred_check
        %p404 = pneg %p403
      $region58: #{tpu_custom_call.1} parent=5 // pred_check_branch
        %406 = sbr.rel (%p404) target = $region60
      $region59: #{tpu_custom_call.1} parent=5 // pred_region
        %s407 = ssub.s32 %s21, 2
        // Predicated region
        $region61: #{tpu_custom_call.1} parent=59 // pred_check
          %p408 = pneg %p162
        $region62: #{tpu_custom_call.1} parent=59 // pred_check_branch
          %410 = sbr.rel (%p408) target = $region64
        $region63: #{tpu_custom_call.1} parent=59 // pred_region
          %s411 = sand.u32 %s147, 1
          %s412 = scalar_lea.sflag [#allocation4], %s411
          %s413 = sand.u32 %s147, 1
          %s414 = smul.addr %s413, 8
          %s415 = scalar_lea.vmem [#allocation11], %s414
          %416 = dma.done %s412, 128
        $region64: #{tpu_custom_call.1} parent=59 // pred_fallthru
          _
      $region60: #{tpu_custom_call.1} parent=5 // pred_fallthru
        _
    $region6: #{tpu_custom_call.1} parent=1 // loop_footer
      %s25 = sadd.s32 1, %s21
    $region7: #{tpu_custom_call.1} parent=1 // loop_footer_branch
      %20 = sbr.rel target = $region3
    $region8: #{tpu_custom_call.1} parent=1 // loop_exit
      _
    %417 = vsyncpa [#allocation3], 1
    %s418 = scalar_lea.sflag [#allocation3], 1
    %419 = vsyncpa %s418, 1
    %420 = vsyncpa [#allocation10], 1
    %s421 = scalar_lea.sflag [#allocation10], 1
    %422 = vsyncpa %s421, 1
    %423 = vsyncpa [#allocation4], 1
    %s424 = scalar_lea.sflag [#allocation4], 1
    %425 = vsyncpa %s424, 1
    %426 = vsyncpa [#allocation5], 1
    %s427 = scalar_lea.sflag [#allocation5], 1
    %428 = vsyncpa %s427, 1
    %429 = vsyncpa [#allocation6], 1
    %s430 = scalar_lea.sflag [#allocation6], 1
    %431 = vsyncpa %s430, 1

</llo_original>
